<compile_context>
chip_gen: v5e
topology: v5e:2x2
jax: 0.10.0
libtpu: 0.0.40
codegen_flags: <defaults>
</compile_context>

<pallas_src>
import jax
import jax.numpy as jnp
from jax.experimental import pallas as pl
from jax.experimental.pallas import tpu as pltpu


def _chamfer_kernel(gts_ref, predsT_ref, s1_ref, s2_ref, minr_ref):
    """One grid step: TB batch elements x one TNJ-wide tile of preds.

    gts_ref:    (TB, N, 3)    gts points
    predsT_ref: (TB, 3, TNJ)  preds points, coordinate rows (lane-dense)
    s1_ref:     (TB, 1, 1)    sum_j min_i P[i, j]  (accumulated over j tiles)
    s2_ref:     (TB, 1, 1)    sum_i min_j P[i, j]  (written on the last j tile)
    minr_ref:   (TB, N, 1)    running min over preds per gts point (scratch)
    """
    jt = pl.program_id(1)
    last_jt = pl.num_programs(1) - 1
    tb = gts_ref.shape[0]

    @pl.when(jt == 0)
    def _init():
        s1_ref[...] = jnp.zeros_like(s1_ref)
        minr_ref[...] = jnp.full(minr_ref.shape, jnp.inf, dtype=minr_ref.dtype)

    for bb in range(tb):
        g = gts_ref[bb].astype(jnp.float32)      # (N, 3)   columns g[:, d:d+1]
        p = predsT_ref[bb].astype(jnp.float32)   # (3, TNJ) rows    p[d:d+1, :]

        # P[i, j] = ||g_i - p_j||^2 via broadcasted squared differences:
        # pure VPU work (8 elementwise ops / element), no MXU, no transposes.
        d = g[:, 0:1] - p[0:1, :]
        dist = d * d
        d = g[:, 1:2] - p[1:2, :]
        dist = dist + d * d
        d = g[:, 2:3] - p[2:3, :]
        dist = dist + d * d                       # (N, TNJ)

        # min over gts (axis 0) -> per-pred mins for this tile; reduce straight
        # to a (1,1) partial sum (no large / relayouted output stores).
        s1_ref[bb, :, :] = s1_ref[bb, :, :] + jnp.sum(
            jnp.min(dist, axis=0, keepdims=True), keepdims=True)

        # running min over preds (axis 1) for every gts point.
        minr_ref[bb, :, :] = jnp.minimum(
            minr_ref[bb, :, :], jnp.min(dist, axis=1, keepdims=True))

    @pl.when(jt == last_jt)
    def _finalize():
        for bb in range(tb):
            s2_ref[bb, :, :] = jnp.sum(minr_ref[bb, :, :], keepdims=True)


def _pick_batch_tile(b):
    # Largest of {8, 4, 2, 1} that divides the batch (amortizes grid-step cost).
    for cand in (8, 4, 2, 1):
        if b % cand == 0:
            return cand
    return 1


def _pick_preds_tile(n, max_tile_j=None):
    # Tile the preds axis in multiples of 128 lanes; keep the (N, TNJ) f32
    # distance tile bounded (~8 MiB) so large N fits VMEM on every generation.
    if n % 128 != 0:
        return n  # full extent: block dim == array dim is always legal
    if max_tile_j is None:
        max_tile_j = max(128, (2 * 1024 * 1024) // n)
    best = 128
    t = 128
    limit = min(n, max(128, max_tile_j))
    while t <= limit:
        if n % t == 0:
            best = t
        t += 128
    return best


def chamfer_loss(preds, gts, *, max_tile_j=None):
    """Chamfer loss matching the PyTorch ChamferLoss.forward semantics.

    preds, gts: arrays of shape [B, N, 3].  Returns a scalar float32.
    """
    assert preds.shape[2] == 3 and gts.shape[2] == 3, \
        "Inputs must have shape [batch_size, num_points, 3]"
    assert preds.shape[1] == gts.shape[1], \
        "Inputs must have the same number of points"
    assert preds.shape[0] == gts.shape[0], "Batch sizes must match"

    B, N, _ = preds.shape
    TB = _pick_batch_tile(B)
    TNJ = _pick_preds_tile(N, max_tile_j)
    n_jt = N // TNJ  # TNJ divides N (or equals N) by construction

    # Lane-dense coordinate rows for preds (cheap O(B*N*3) wrapper op).
    predsT = jnp.swapaxes(preds, 1, 2)  # (B, 3, N)

    # Rough per-step VMEM estimate (lane/sublane padded); only raise the
    # scoped VMEM limit when the defaults would be exceeded.
    def _ru(x, m):
        return ((x + m - 1) // m) * m

    def _padded_bytes(rows, cols):
        return _ru(rows, 8) * _ru(cols, 128) * 4

    est_vmem = (2 * TB * _padded_bytes(N, 3)        # gts block, double-buffered
                + 2 * TB * _padded_bytes(3, TNJ)    # preds block, double-buffered
                + TB * _padded_bytes(N, 1)          # running-min scratch
                + 3 * _padded_bytes(N, TNJ))        # distance tile + temporaries
    vmem_limit = None
    if est_vmem > 16 * 1024 * 1024:
        vmem_limit = int(min(2 * est_vmem, 64 * 1024 * 1024))

    cost = pl.CostEstimate(
        flops=8 * B * N * N,
        transcendentals=0,
        bytes_accessed=2 * B * N * 3 * preds.dtype.itemsize + 2 * B * 4,
    )

    s1, s2 = pl.pallas_call(
        _chamfer_kernel,
        out_shape=(
            jax.ShapeDtypeStruct((B, 1, 1), jnp.float32),  # sum_j min_i P
            jax.ShapeDtypeStruct((B, 1, 1), jnp.float32),  # sum_i min_j P
        ),
        grid_spec=pltpu.PrefetchScalarGridSpec(
            num_scalar_prefetch=0,
            grid=(B // TB, n_jt),
            in_specs=[
                pl.BlockSpec((TB, N, 3), lambda b, jt: (b, 0, 0)),     # gts
                pl.BlockSpec((TB, 3, TNJ), lambda b, jt: (b, 0, jt)),  # predsT
            ],
            out_specs=[
                pl.BlockSpec((TB, 1, 1), lambda b, jt: (b, 0, 0)),
                pl.BlockSpec((TB, 1, 1), lambda b, jt: (b, 0, 0)),
            ],
            scratch_shapes=[pltpu.VMEM((TB, N, 1), jnp.float32)],
        ),
        compiler_params=pltpu.CompilerParams(
            dimension_semantics=("parallel", "arbitrary"),
            vmem_limit_bytes=vmem_limit,
        ),
        cost_estimate=cost,
    )(gts, predsT)

    denom = jnp.float32(B * N)
    loss_pred_to_gt = jnp.sum(s1) / denom   # mean of min over gts points
    loss_gt_to_pred = jnp.sum(s2) / denom   # mean of min over pred points
    return loss_pred_to_gt + loss_gt_to_pred


def _chamfer_ref(preds, gts):
    """Pure-JAX reference mirroring the PyTorch code (for sanity check)."""
    xx = jnp.sum(gts ** 2, axis=-1, keepdims=True)       # (B, Ng, 1)
    yy = jnp.sum(preds ** 2, axis=-1, keepdims=True)     # (B, Np, 1)
    zz = jnp.einsum("bid,bjd->bij", gts, preds)          # (B, Ng, Np)
    P = xx + jnp.swapaxes(yy, 1, 2) - 2.0 * zz
    return jnp.mean(jnp.min(P, axis=1)) + jnp.mean(jnp.min(P, axis=2))


if __name__ == "__main__":
    key = jax.random.PRNGKey(0)
    k1, k2, k3, k4 = jax.random.split(key, 4)

    # Config 1: small point clouds, single preds tile.
    B, N = 2, 128
    preds = jax.random.normal(k1, (B, N, 3), dtype=jnp.float32)
    gts = jax.random.normal(k2, (B, N, 3), dtype=jnp.float32)
    loss = jax.jit(chamfer_loss)(preds, gts)
    jax.block_until_ready(loss)
    ref = _chamfer_ref(preds, gts)
    assert jnp.allclose(loss, ref, rtol=1e-4, atol=1e-4), (loss, ref)

    # Config 2: exercise the multi-tile running-min path (2 preds tiles, TB=4).
    B2, N2 = 4, 256
    preds2 = jax.random.normal(k3, (B2, N2, 3), dtype=jnp.float32)
    gts2 = jax.random.normal(k4, (B2, N2, 3), dtype=jnp.float32)
    loss2 = jax.jit(lambda p, g: chamfer_loss(p, g, max_tile_j=128))(preds2, gts2)
    jax.block_until_ready(loss2)
    ref2 = _chamfer_ref(preds2, gts2)
    assert jnp.allclose(loss2, ref2, rtol=1e-4, atol=1e-4), (loss2, ref2)

    print("KERNEL_OK")
</pallas_src>

<mosaic_0001>
module attributes {stable_mosaic.version = 11 : i64} {
  func.func @_chamfer_kernel(%arg0: i32, %arg1: i32, %arg2: memref<2x128x3xf32, #tpu.memory_space<vmem>>, %arg3: memref<2x3x128xf32, #tpu.memory_space<vmem>>, %arg4: memref<2x1x1xf32, #tpu.memory_space<vmem>>, %arg5: memref<2x1x1xf32, #tpu.memory_space<vmem>>, %arg6: memref<2x128x1xf32, #tpu.memory_space<vmem>>) attributes {dimension_semantics = [#tpu.dimension_semantics<parallel>, #tpu.dimension_semantics<arbitrary>], iteration_bounds = array<i64: 1, 1>, scalar_prefetch = 0 : i64, scratch_operands = 1 : i64, tpu.core_type = #tpu.core_type<tc>, window_params = [{transform_indices = @transform_0, window_bounds = array<i64: 2, 128, 3>}, {transform_indices = @transform_1, window_bounds = array<i64: 2, 3, 128>}, {transform_indices = @transform_2, window_bounds = array<i64: 2, 1, 1>}, {transform_indices = @transform_3, window_bounds = array<i64: 2, 1, 1>}]} {
    %c0_i32 = arith.constant 0 : i32
    %0 = arith.cmpi eq, %arg1, %c0_i32 : i32
    %1 = arith.extui %0 : i1 to i32
    %c0_i32_0 = arith.constant 0 : i32
    %2 = arith.cmpi ne, %1, %c0_i32_0 : i32
    scf.if %2 {
      %cst_42 = arith.constant 0.000000e+00 : f32
      %96 = vector.broadcast %cst_42 : f32 to vector<2x1x1xf32>
      %c0_43 = arith.constant 0 : index
      %c0_44 = arith.constant 0 : index
      %c0_45 = arith.constant 0 : index
      %97 = vector.load %arg4[%c0_43, %c0_44, %c0_45] : memref<2x1x1xf32, #tpu.memory_space<vmem>>, vector<2x1x1xf32>
      tpu.vector_store %arg4[%c0_43, %c0_44, %c0_45], %96 {strides = array<i32>} : memref<2x1x1xf32, #tpu.memory_space<vmem>>, vector<2x1x1xf32>,
      %cst_46 = arith.constant 0x7F800000 : f32
      %98 = vector.broadcast %cst_46 : f32 to vector<2x128x1xf32>
      %c0_47 = arith.constant 0 : index
      %c0_48 = arith.constant 0 : index
      %c0_49 = arith.constant 0 : index
      %99 = vector.load %arg6[%c0_47, %c0_48, %c0_49] : memref<2x128x1xf32, #tpu.memory_space<vmem>>, vector<2x128x1xf32>
      tpu.vector_store %arg6[%c0_47, %c0_48, %c0_49], %98 {strides = array<i32>} : memref<2x128x1xf32, #tpu.memory_space<vmem>>, vector<2x128x1xf32>,
    } else {
    }
    %c0 = arith.constant 0 : index
    %c0_1 = arith.constant 0 : index
    %c0_2 = arith.constant 0 : index
    %3 = vector.load %arg2[%c0, %c0_1, %c0_2] : memref<2x128x3xf32, #tpu.memory_space<vmem>>, vector<1x128x3xf32>
    %4 = vector.shape_cast %3 : vector<1x128x3xf32> to vector<128x3xf32>
    %c0_3 = arith.constant 0 : index
    %c0_4 = arith.constant 0 : index
    %c0_5 = arith.constant 0 : index
    %5 = vector.load %arg3[%c0_3, %c0_4, %c0_5] : memref<2x3x128xf32, #tpu.memory_space<vmem>>, vector<1x3x128xf32>
    %6 = vector.shape_cast %5 : vector<1x3x128xf32> to vector<3x128xf32>
    %7 = vector.extract_strided_slice %4 {offsets = [0, 0], sizes = [128, 1], strides = [1, 1]} : vector<128x3xf32> to vector<128x1xf32>
    %8 = vector.extract_strided_slice %6 {offsets = [0, 0], sizes = [1, 128], strides = [1, 1]} : vector<3x128xf32> to vector<1x128xf32>
    %9 = vector.broadcast %7 : vector<128x1xf32> to vector<128x128xf32>
    %10 = vector.broadcast %8 : vector<1x128xf32> to vector<128x128xf32>
    %11 = arith.subf %9, %10 : vector<128x128xf32>
    %12 = arith.mulf %11, %11 : vector<128x128xf32>
    %13 = vector.extract_strided_slice %4 {offsets = [0, 1], sizes = [128, 1], strides = [1, 1]} : vector<128x3xf32> to vector<128x1xf32>
    %14 = vector.extract_strided_slice %6 {offsets = [1, 0], sizes = [1, 128], strides = [1, 1]} : vector<3x128xf32> to vector<1x128xf32>
    %15 = vector.broadcast %13 : vector<128x1xf32> to vector<128x128xf32>
    %16 = vector.broadcast %14 : vector<1x128xf32> to vector<128x128xf32>
    %17 = arith.subf %15, %16 : vector<128x128xf32>
    %18 = arith.mulf %17, %17 : vector<128x128xf32>
    %19 = arith.addf %12, %18 : vector<128x128xf32>
    %20 = vector.extract_strided_slice %4 {offsets = [0, 2], sizes = [128, 1], strides = [1, 1]} : vector<128x3xf32> to vector<128x1xf32>
    %21 = vector.extract_strided_slice %6 {offsets = [2, 0], sizes = [1, 128], strides = [1, 1]} : vector<3x128xf32> to vector<1x128xf32>
    %22 = vector.broadcast %20 : vector<128x1xf32> to vector<128x128xf32>
    %23 = vector.broadcast %21 : vector<1x128xf32> to vector<128x128xf32>
    %24 = arith.subf %22, %23 : vector<128x128xf32>
    %25 = arith.mulf %24, %24 : vector<128x128xf32>
    %26 = arith.addf %19, %25 : vector<128x128xf32>
    %c0_6 = arith.constant 0 : index
    %c0_7 = arith.constant 0 : index
    %c0_8 = arith.constant 0 : index
    %27 = vector.load %arg4[%c0_6, %c0_7, %c0_8] : memref<2x1x1xf32, #tpu.memory_space<vmem>>, vector<1x1x1xf32>
    %28 = vector.shape_cast %27 : vector<1x1x1xf32> to vector<1x1xf32>
    %cst = arith.constant dense<0x7F800000> : vector<128xf32>
    %29 = vector.multi_reduction <minimumf>, %26, %cst [0] : vector<128x128xf32> to vector<128xf32>
    %30 = vector.shape_cast %29 : vector<128xf32> to vector<1x128xf32>
    %31 = vector.shape_cast %30 : vector<1x128xf32> to vector<1x1x128xf32>
    %cst_9 = arith.constant dense<0.000000e+00> : vector<1xf32>
    %32 = vector.multi_reduction <add>, %31, %cst_9 [1, 2] : vector<1x1x128xf32> to vector<1xf32>
    %33 = vector.shape_cast %32 : vector<1xf32> to vector<1x1x1xf32>
    %34 = vector.extract %33[0, 0, 0] : f32 from vector<1x1x1xf32>
    %35 = vector.broadcast %34 : f32 to vector<1x1xf32>
    %36 = arith.addf %28, %35 : vector<1x1xf32>
    %c0_10 = arith.constant 0 : index
    %c0_11 = arith.constant 0 : index
    %c0_12 = arith.constant 0 : index
    %37 = vector.load %arg4[%c0_10, %c0_11, %c0_12] : memref<2x1x1xf32, #tpu.memory_space<vmem>>, vector<1x1x1xf32>
    %38 = vector.shape_cast %37 : vector<1x1x1xf32> to vector<1x1xf32>
    %39 = vector.shape_cast %36 : vector<1x1xf32> to vector<1x1x1xf32>
    tpu.vector_store %arg4[%c0_10, %c0_11, %c0_12], %39 {strides = array<i32>} : memref<2x1x1xf32, #tpu.memory_space<vmem>>, vector<1x1x1xf32>,
    %c0_13 = arith.constant 0 : index
    %c0_14 = arith.constant 0 : index
    %c0_15 = arith.constant 0 : index
    %40 = vector.load %arg6[%c0_13, %c0_14, %c0_15] : memref<2x128x1xf32, #tpu.memory_space<vmem>>, vector<1x128x1xf32>
    %41 = vector.shape_cast %40 : vector<1x128x1xf32> to vector<128x1xf32>
    %cst_16 = arith.constant dense<0x7F800000> : vector<128xf32>
    %42 = vector.multi_reduction <minimumf>, %26, %cst_16 [1] : vector<128x128xf32> to vector<128xf32>
    %43 = vector.shape_cast %42 : vector<128xf32> to vector<128x1xf32>
    %44 = arith.minimumf %41, %43 : vector<128x1xf32>
    %c0_17 = arith.constant 0 : index
    %c0_18 = arith.constant 0 : index
    %c0_19 = arith.constant 0 : index
    %45 = vector.load %arg6[%c0_17, %c0_18, %c0_19] : memref<2x128x1xf32, #tpu.memory_space<vmem>>, vector<1x128x1xf32>
    %46 = vector.shape_cast %45 : vector<1x128x1xf32> to vector<128x1xf32>
    %47 = vector.shape_cast %44 : vector<128x1xf32> to vector<1x128x1xf32>
    tpu.vector_store %arg6[%c0_17, %c0_18, %c0_19], %47 {strides = array<i32>} : memref<2x128x1xf32, #tpu.memory_space<vmem>>, vector<1x128x1xf32>,
    %c1 = arith.constant 1 : index
    %c0_20 = arith.constant 0 : index
    %c0_21 = arith.constant 0 : index
    %48 = vector.load %arg2[%c1, %c0_20, %c0_21] : memref<2x128x3xf32, #tpu.memory_space<vmem>>, vector<1x128x3xf32>
    %49 = vector.shape_cast %48 : vector<1x128x3xf32> to vector<128x3xf32>
    %c1_22 = arith.constant 1 : index
    %c0_23 = arith.constant 0 : index
    %c0_24 = arith.constant 0 : index
    %50 = vector.load %arg3[%c1_22, %c0_23, %c0_24] : memref<2x3x128xf32, #tpu.memory_space<vmem>>, vector<1x3x128xf32>
    %51 = vector.shape_cast %50 : vector<1x3x128xf32> to vector<3x128xf32>
    %52 = vector.extract_strided_slice %49 {offsets = [0, 0], sizes = [128, 1], strides = [1, 1]} : vector<128x3xf32> to vector<128x1xf32>
    %53 = vector.extract_strided_slice %51 {offsets = [0, 0], sizes = [1, 128], strides = [1, 1]} : vector<3x128xf32> to vector<1x128xf32>
    %54 = vector.broadcast %52 : vector<128x1xf32> to vector<128x128xf32>
    %55 = vector.broadcast %53 : vector<1x128xf32> to vector<128x128xf32>
    %56 = arith.subf %54, %55 : vector<128x128xf32>
    %57 = arith.mulf %56, %56 : vector<128x128xf32>
    %58 = vector.extract_strided_slice %49 {offsets = [0, 1], sizes = [128, 1], strides = [1, 1]} : vector<128x3xf32> to vector<128x1xf32>
    %59 = vector.extract_strided_slice %51 {offsets = [1, 0], sizes = [1, 128], strides = [1, 1]} : vector<3x128xf32> to vector<1x128xf32>
    %60 = vector.broadcast %58 : vector<128x1xf32> to vector<128x128xf32>
    %61 = vector.broadcast %59 : vector<1x128xf32> to vector<128x128xf32>
    %62 = arith.subf %60, %61 : vector<128x128xf32>
    %63 = arith.mulf %62, %62 : vector<128x128xf32>
    %64 = arith.addf %57, %63 : vector<128x128xf32>
    %65 = vector.extract_strided_slice %49 {offsets = [0, 2], sizes = [128, 1], strides = [1, 1]} : vector<128x3xf32> to vector<128x1xf32>
    %66 = vector.extract_strided_slice %51 {offsets = [2, 0], sizes = [1, 128], strides = [1, 1]} : vector<3x128xf32> to vector<1x128xf32>
    %67 = vector.broadcast %65 : vector<128x1xf32> to vector<128x128xf32>
    %68 = vector.broadcast %66 : vector<1x128xf32> to vector<128x128xf32>
    %69 = arith.subf %67, %68 : vector<128x128xf32>
    %70 = arith.mulf %69, %69 : vector<128x128xf32>
    %71 = arith.addf %64, %70 : vector<128x128xf32>
    %c1_25 = arith.constant 1 : index
    %c0_26 = arith.constant 0 : index
    %c0_27 = arith.constant 0 : index
    %72 = vector.load %arg4[%c1_25, %c0_26, %c0_27] : memref<2x1x1xf32, #tpu.memory_space<vmem>>, vector<1x1x1xf32>
    %73 = vector.shape_cast %72 : vector<1x1x1xf32> to vector<1x1xf32>
    %cst_28 = arith.constant dense<0x7F800000> : vector<128xf32>
    %74 = vector.multi_reduction <minimumf>, %71, %cst_28 [0] : vector<128x128xf32> to vector<128xf32>
    %75 = vector.shape_cast %74 : vector<128xf32> to vector<1x128xf32>
    %76 = vector.shape_cast %75 : vector<1x128xf32> to vector<1x1x128xf32>
    %cst_29 = arith.constant dense<0.000000e+00> : vector<1xf32>
    %77 = vector.multi_reduction <add>, %76, %cst_29 [1, 2] : vector<1x1x128xf32> to vector<1xf32>
    %78 = vector.shape_cast %77 : vector<1xf32> to vector<1x1x1xf32>
    %79 = vector.extract %78[0, 0, 0] : f32 from vector<1x1x1xf32>
    %80 = vector.broadcast %79 : f32 to vector<1x1xf32>
    %81 = arith.addf %73, %80 : vector<1x1xf32>
    %c1_30 = arith.constant 1 : index
    %c0_31 = arith.constant 0 : index
    %c0_32 = arith.constant 0 : index
    %82 = vector.load %arg4[%c1_30, %c0_31, %c0_32] : memref<2x1x1xf32, #tpu.memory_space<vmem>>, vector<1x1x1xf32>
    %83 = vector.shape_cast %82 : vector<1x1x1xf32> to vector<1x1xf32>
    %84 = vector.shape_cast %81 : vector<1x1xf32> to vector<1x1x1xf32>
    tpu.vector_store %arg4[%c1_30, %c0_31, %c0_32], %84 {strides = array<i32>} : memref<2x1x1xf32, #tpu.memory_space<vmem>>, vector<1x1x1xf32>,
    %c1_33 = arith.constant 1 : index
    %c0_34 = arith.constant 0 : index
    %c0_35 = arith.constant 0 : index
    %85 = vector.load %arg6[%c1_33, %c0_34, %c0_35] : memref<2x128x1xf32, #tpu.memory_space<vmem>>, vector<1x128x1xf32>
    %86 = vector.shape_cast %85 : vector<1x128x1xf32> to vector<128x1xf32>
    %cst_36 = arith.constant dense<0x7F800000> : vector<128xf32>
    %87 = vector.multi_reduction <minimumf>, %71, %cst_36 [1] : vector<128x128xf32> to vector<128xf32>
    %88 = vector.shape_cast %87 : vector<128xf32> to vector<128x1xf32>
    %89 = arith.minimumf %86, %88 : vector<128x1xf32>
    %c1_37 = arith.constant 1 : index
    %c0_38 = arith.constant 0 : index
    %c0_39 = arith.constant 0 : index
    %90 = vector.load %arg6[%c1_37, %c0_38, %c0_39] : memref<2x128x1xf32, #tpu.memory_space<vmem>>, vector<1x128x1xf32>
    %91 = vector.shape_cast %90 : vector<1x128x1xf32> to vector<128x1xf32>
    %92 = vector.shape_cast %89 : vector<128x1xf32> to vector<1x128x1xf32>
    tpu.vector_store %arg6[%c1_37, %c0_38, %c0_39], %92 {strides = array<i32>} : memref<2x128x1xf32, #tpu.memory_space<vmem>>, vector<1x128x1xf32>,
    %c0_i32_40 = arith.constant 0 : i32
    %93 = arith.cmpi eq, %arg1, %c0_i32_40 : i32
    %94 = arith.extui %93 : i1 to i32
    %c0_i32_41 = arith.constant 0 : i32
    %95 = arith.cmpi ne, %94, %c0_i32_41 : i32
    scf.if %95 {
      %c0_42 = arith.constant 0 : index
      %c0_43 = arith.constant 0 : index
      %c0_44 = arith.constant 0 : index
      %96 = vector.load %arg6[%c0_42, %c0_43, %c0_44] : memref<2x128x1xf32, #tpu.memory_space<vmem>>, vector<1x128x1xf32>
      %97 = vector.shape_cast %96 : vector<1x128x1xf32> to vector<128x1xf32>
      %98 = vector.shape_cast %97 : vector<128x1xf32> to vector<1x128x1xf32>
      %cst_45 = arith.constant dense<0.000000e+00> : vector<1xf32>
      %99 = vector.multi_reduction <add>, %98, %cst_45 [1, 2] : vector<1x128x1xf32> to vector<1xf32>
      %100 = vector.shape_cast %99 : vector<1xf32> to vector<1x1x1xf32>
      %101 = vector.extract %100[0, 0, 0] : f32 from vector<1x1x1xf32>
      %102 = vector.broadcast %101 : f32 to vector<1x1xf32>
      %c0_46 = arith.constant 0 : index
      %c0_47 = arith.constant 0 : index
      %c0_48 = arith.constant 0 : index
      %103 = vector.load %arg5[%c0_46, %c0_47, %c0_48] : memref<2x1x1xf32, #tpu.memory_space<vmem>>, vector<1x1x1xf32>
      %104 = vector.shape_cast %103 : vector<1x1x1xf32> to vector<1x1xf32>
      %105 = vector.shape_cast %102 : vector<1x1xf32> to vector<1x1x1xf32>
      tpu.vector_store %arg5[%c0_46, %c0_47, %c0_48], %105 {strides = array<i32>} : memref<2x1x1xf32, #tpu.memory_space<vmem>>, vector<1x1x1xf32>,
      %c1_49 = arith.constant 1 : index
      %c0_50 = arith.constant 0 : index
      %c0_51 = arith.constant 0 : index
      %106 = vector.load %arg6[%c1_49, %c0_50, %c0_51] : memref<2x128x1xf32, #tpu.memory_space<vmem>>, vector<1x128x1xf32>
      %107 = vector.shape_cast %106 : vector<1x128x1xf32> to vector<128x1xf32>
      %108 = vector.shape_cast %107 : vector<128x1xf32> to vector<1x128x1xf32>
      %cst_52 = arith.constant dense<0.000000e+00> : vector<1xf32>
      %109 = vector.multi_reduction <add>, %108, %cst_52 [1, 2] : vector<1x128x1xf32> to vector<1xf32>
      %110 = vector.shape_cast %109 : vector<1xf32> to vector<1x1x1xf32>
      %111 = vector.extract %110[0, 0, 0] : f32 from vector<1x1x1xf32>
      %112 = vector.broadcast %111 : f32 to vector<1x1xf32>
      %c1_53 = arith.constant 1 : index
      %c0_54 = arith.constant 0 : index
      %c0_55 = arith.constant 0 : index
      %113 = vector.load %arg5[%c1_53, %c0_54, %c0_55] : memref<2x1x1xf32, #tpu.memory_space<vmem>>, vector<1x1x1xf32>
      %114 = vector.shape_cast %113 : vector<1x1x1xf32> to vector<1x1xf32>
      %115 = vector.shape_cast %112 : vector<1x1xf32> to vector<1x1x1xf32>
      tpu.vector_store %arg5[%c1_53, %c0_54, %c0_55], %115 {strides = array<i32>} : memref<2x1x1xf32, #tpu.memory_space<vmem>>, vector<1x1x1xf32>,
    } else {
    }
    return
  }
  func.func @transform_0(%arg0: i32, %arg1: i32) -> (i32, i32, i32) {
    %c0_i32 = arith.constant 0 : i32
    %c0_i32_0 = arith.constant 0 : i32
    %c0_i32_1 = arith.constant 0 : i32
    return %arg0, %c0_i32, %c0_i32_0 : i32, i32, i32
  }
  func.func @transform_1(%arg0: i32, %arg1: i32) -> (i32, i32, i32) {
    %c0_i32 = arith.constant 0 : i32
    %c0_i32_0 = arith.constant 0 : i32
    return %arg0, %c0_i32, %arg1 : i32, i32, i32
  }
  func.func @transform_2(%arg0: i32, %arg1: i32) -> (i32, i32, i32) {
    %c0_i32 = arith.constant 0 : i32
    %c0_i32_0 = arith.constant 0 : i32
    %c0_i32_1 = arith.constant 0 : i32
    return %arg0, %c0_i32, %c0_i32_0 : i32, i32, i32
  }
  func.func @transform_3(%arg0: i32, %arg1: i32) -> (i32, i32, i32) {
    %c0_i32 = arith.constant 0 : i32
    %c0_i32_0 = arith.constant 0 : i32
    %c0_i32_1 = arith.constant 0 : i32
    return %arg0, %c0_i32, %c0_i32_0 : i32, i32, i32
  }
}

</mosaic_0001>

<llo_original>
// kernel: chamfer_loss.1
$region0: #{chamfer_loss.1}
  #allocation0 [shape = 'u32[]', space=smem, size = 0x4, offset = 0x4, fixed_abs, tag = 'smem constant byte address 0x4 - core index']
  #allocation1 [shape = 'u32[72,128]{1,0:T(1,128)}', space=vmem, size = 0x9000, scoped, tag = 'internal scratch']
  #allocation2 [shape = 'f32[2,128,1]{2,1,0:T(8,128)}', space=vmem, size = 0x20000, scoped, tag = 'scratch operand']
  %s0 = inlined_call_operand.vmem [shape: f32[2,128,3], index: 0, kind: input, shape index: {}]
  %s1 = inlined_call_operand.vmem [shape: f32[2,3,128], index: 1, kind: input, shape index: {}]
  %s2 = inlined_call_operand.vmem [shape: f32[2,1,1], index: 2, kind: output, shape index: {0}]
  %s3 = inlined_call_operand.vmem [shape: f32[2,1,1], index: 3, kind: output, shape index: {1}]
  %4 = xla_tuple %s2, %s3
  %s5 = sld [smem:[#allocation0]]
  $region34: #{chamfer_loss.1} parent=0
    _
  %s7 = ssub.s32 1, %s5
  %s8 = scalar_select 0, %s7, %s5
  // Predicated region
  $region2: #{chamfer_loss.1} parent=0 // pred_check
    _
  $region3: #{chamfer_loss.1} parent=0 // pred_check_branch
    %10 = sbr.rel (0) target = $region5
  $region4: #{chamfer_loss.1} parent=0 // pred_region
    _
  $region5: #{chamfer_loss.1} parent=0 // pred_fallthru
    _
  // Predicated region
  $region6: #{chamfer_loss.1} parent=0 // pred_check
    _
  $region7: #{chamfer_loss.1} parent=0 // pred_check_branch
    %12 = sbr.rel (0) target = $region9
  $region8: #{chamfer_loss.1} parent=0 // pred_region
    _
  $region9: #{chamfer_loss.1} parent=0 // pred_fallthru
    _
  %p13 = scmp.eq.s32.totalorder 0, 0
  // Predicated region
  $region10: #{chamfer_loss.1} parent=0 // pred_check
    %p14 = pneg %p13
  $region11: #{chamfer_loss.1} parent=0 // pred_check_branch
    %16 = sbr.rel (%p14) target = $region13
  $region12: #{chamfer_loss.1} parent=0 // pred_region
    %vm17 = vcmask 0
    %18 = vst.msk [vmem:[%s2] sm:$0x1] %vm17, 0.0
    %19 = vst.msk [vmem:[%s2 + $0x1] sm:$0x1] %vm17, 0.0
    %vm20 = vcmask 7168
    %21 = vst.msk [vmem:[#allocation2] sm:$0xff] %vm20, inf
    %22 = vst.msk [vmem:[#allocation2 + $0x8] sm:$0xff] %vm20, inf
    %23 = vst.msk [vmem:[#allocation2 + $0x10] sm:$0xff] %vm20, inf
    %24 = vst.msk [vmem:[#allocation2 + $0x18] sm:$0xff] %vm20, inf
    %25 = vst.msk [vmem:[#allocation2 + $0x20] sm:$0xff] %vm20, inf
    %26 = vst.msk [vmem:[#allocation2 + $0x28] sm:$0xff] %vm20, inf
    %27 = vst.msk [vmem:[#allocation2 + $0x30] sm:$0xff] %vm20, inf
    %28 = vst.msk [vmem:[#allocation2 + $0x38] sm:$0xff] %vm20, inf
    %29 = vst.msk [vmem:[#allocation2 + $0x40] sm:$0xff] %vm20, inf
    %30 = vst.msk [vmem:[#allocation2 + $0x48] sm:$0xff] %vm20, inf
    %31 = vst.msk [vmem:[#allocation2 + $0x50] sm:$0xff] %vm20, inf
    %32 = vst.msk [vmem:[#allocation2 + $0x58] sm:$0xff] %vm20, inf
    %33 = vst.msk [vmem:[#allocation2 + $0x60] sm:$0xff] %vm20, inf
    %34 = vst.msk [vmem:[#allocation2 + $0x68] sm:$0xff] %vm20, inf
    %35 = vst.msk [vmem:[#allocation2 + $0x70] sm:$0xff] %vm20, inf
    %36 = vst.msk [vmem:[#allocation2 + $0x78] sm:$0xff] %vm20, inf
    %37 = vst.msk [vmem:[#allocation2 + $0x80] sm:$0xff] %vm20, inf
    %38 = vst.msk [vmem:[#allocation2 + $0x88] sm:$0xff] %vm20, inf
    %39 = vst.msk [vmem:[#allocation2 + $0x90] sm:$0xff] %vm20, inf
    %40 = vst.msk [vmem:[#allocation2 + $0x98] sm:$0xff] %vm20, inf
    %41 = vst.msk [vmem:[#allocation2 + $0xa0] sm:$0xff] %vm20, inf
    %42 = vst.msk [vmem:[#allocation2 + $0xa8] sm:$0xff] %vm20, inf
    %43 = vst.msk [vmem:[#allocation2 + $0xb0] sm:$0xff] %vm20, inf
    %44 = vst.msk [vmem:[#allocation2 + $0xb8] sm:$0xff] %vm20, inf
    %45 = vst.msk [vmem:[#allocation2 + $0xc0] sm:$0xff] %vm20, inf
    %46 = vst.msk [vmem:[#allocation2 + $0xc8] sm:$0xff] %vm20, inf
    %47 = vst.msk [vmem:[#allocation2 + $0xd0] sm:$0xff] %vm20, inf
    %48 = vst.msk [vmem:[#allocation2 + $0xd8] sm:$0xff] %vm20, inf
    %49 = vst.msk [vmem:[#allocation2 + $0xe0] sm:$0xff] %vm20, inf
    %50 = vst.msk [vmem:[#allocation2 + $0xe8] sm:$0xff] %vm20, inf
    %51 = vst.msk [vmem:[#allocation2 + $0xf0] sm:$0xff] %vm20, inf
    %52 = vst.msk [vmem:[#allocation2 + $0xf8] sm:$0xff] %vm20, inf
  $region13: #{chamfer_loss.1} parent=0 // pred_fallthru
    _
  %v53 = vld [vmem:[%s0] sm:$0xff]
  %v54 = vld [vmem:[%s0 + $0x8] sm:$0xff]
  %v55 = vld [vmem:[%s0 + $0x10] sm:$0xff]
  %v56 = vld [vmem:[%s0 + $0x18] sm:$0xff]
  %v57 = vld [vmem:[%s0 + $0x20] sm:$0xff]
  %v58 = vld [vmem:[%s0 + $0x28] sm:$0xff]
  %v59 = vld [vmem:[%s0 + $0x30] sm:$0xff]
  %v60 = vld [vmem:[%s0 + $0x38] sm:$0xff]
  %v61 = vld [vmem:[%s0 + $0x40] sm:$0xff]
  %v62 = vld [vmem:[%s0 + $0x48] sm:$0xff]
  %v63 = vld [vmem:[%s0 + $0x50] sm:$0xff]
  %v64 = vld [vmem:[%s0 + $0x58] sm:$0xff]
  %v65 = vld [vmem:[%s0 + $0x60] sm:$0xff]
  %v66 = vld [vmem:[%s0 + $0x68] sm:$0xff]
  %v67 = vld [vmem:[%s0 + $0x70] sm:$0xff]
  %v68 = vld [vmem:[%s0 + $0x78] sm:$0xff]
  %v69 = vld [vmem:[%s1] sm:$0x7]
  %71 = vset.pattern.permute.xlu0 0
  %72 = vperm.xlu0 %71, %v53
  %v73 = vpop.permute.xlu0 %72
  %76 = vset.pattern.permute.xlu0 0
  %77 = vperm.xlu0 %76, %v54
  %v78 = vpop.permute.xlu0 %77
  %81 = vset.pattern.permute.xlu0 0
  %82 = vperm.xlu0 %81, %v55
  %v83 = vpop.permute.xlu0 %82
  %86 = vset.pattern.permute.xlu0 0
  %87 = vperm.xlu0 %86, %v56
  %v88 = vpop.permute.xlu0 %87
  %91 = vset.pattern.permute.xlu0 0
  %92 = vperm.xlu0 %91, %v57
  %v93 = vpop.permute.xlu0 %92
  %96 = vset.pattern.permute.xlu0 0
  %97 = vperm.xlu0 %96, %v58
  %v98 = vpop.permute.xlu0 %97
  %101 = vset.pattern.permute.xlu0 0
  %102 = vperm.xlu0 %101, %v59
  %v103 = vpop.permute.xlu0 %102
  %106 = vset.pattern.permute.xlu0 0
  %107 = vperm.xlu0 %106, %v60
  %v108 = vpop.permute.xlu0 %107
  %111 = vset.pattern.permute.xlu0 0
  %112 = vperm.xlu0 %111, %v61
  %v113 = vpop.permute.xlu0 %112
  %116 = vset.pattern.permute.xlu0 0
  %117 = vperm.xlu0 %116, %v62
  %v118 = vpop.permute.xlu0 %117
  %121 = vset.pattern.permute.xlu0 0
  %122 = vperm.xlu0 %121, %v63
  %v123 = vpop.permute.xlu0 %122
  %126 = vset.pattern.permute.xlu0 0
  %127 = vperm.xlu0 %126, %v64
  %v128 = vpop.permute.xlu0 %127
  %131 = vset.pattern.permute.xlu0 0
  %132 = vperm.xlu0 %131, %v65
  %v133 = vpop.permute.xlu0 %132
  %136 = vset.pattern.permute.xlu0 0
  %137 = vperm.xlu0 %136, %v66
  %v138 = vpop.permute.xlu0 %137
  %141 = vset.pattern.permute.xlu0 0
  %142 = vperm.xlu0 %141, %v67
  %v143 = vpop.permute.xlu0 %142
  %146 = vset.pattern.permute.xlu0 0
  %147 = vperm.xlu0 %146, %v68
  %v148 = vpop.permute.xlu0 %147
  %v150 = vperm.slane %v69, 0
  %v151 = vsub.f32 %v73, %v150
  %v152 = vsub.f32 %v78, %v150
  %v153 = vsub.f32 %v83, %v150
  %v154 = vsub.f32 %v88, %v150
  %v155 = vsub.f32 %v93, %v150
  %v156 = vsub.f32 %v98, %v150
  %v157 = vsub.f32 %v103, %v150
  %v158 = vsub.f32 %v108, %v150
  %v159 = vsub.f32 %v113, %v150
  %v160 = vsub.f32 %v118, %v150
  %v161 = vsub.f32 %v123, %v150
  %v162 = vsub.f32 %v128, %v150
  %v163 = vsub.f32 %v133, %v150
  %v164 = vsub.f32 %v138, %v150
  %v165 = vsub.f32 %v143, %v150
  %v166 = vsub.f32 %v148, %v150
  %v167 = vmul.f32 %v151, %v151
  %v168 = vmul.f32 %v152, %v152
  %v169 = vmul.f32 %v153, %v153
  %v170 = vmul.f32 %v154, %v154
  %v171 = vmul.f32 %v155, %v155
  %v172 = vmul.f32 %v156, %v156
  %v173 = vmul.f32 %v157, %v157
  %v174 = vmul.f32 %v158, %v158
  %v175 = vmul.f32 %v159, %v159
  %v176 = vmul.f32 %v160, %v160
  %v177 = vmul.f32 %v161, %v161
  %v178 = vmul.f32 %v162, %v162
  %v179 = vmul.f32 %v163, %v163
  %v180 = vmul.f32 %v164, %v164
  %v181 = vmul.f32 %v165, %v165
  %v182 = vmul.f32 %v166, %v166
  %183 = vset.pattern.permute.xlu0 1
  %184 = vperm.xlu0 %183, %v53
  %v185 = vpop.permute.xlu0 %184
  %187 = vset.pattern.permute.xlu0 1
  %188 = vperm.xlu0 %187, %v54
  %v189 = vpop.permute.xlu0 %188
  %191 = vset.pattern.permute.xlu0 1
  %192 = vperm.xlu0 %191, %v55
  %v193 = vpop.permute.xlu0 %192
  %195 = vset.pattern.permute.xlu0 1
  %196 = vperm.xlu0 %195, %v56
  %v197 = vpop.permute.xlu0 %196
  %199 = vset.pattern.permute.xlu0 1
  %200 = vperm.xlu0 %199, %v57
  %v201 = vpop.permute.xlu0 %200
  %203 = vset.pattern.permute.xlu0 1
  %204 = vperm.xlu0 %203, %v58
  %v205 = vpop.permute.xlu0 %204
  %207 = vset.pattern.permute.xlu0 1
  %208 = vperm.xlu0 %207, %v59
  %v209 = vpop.permute.xlu0 %208
  %211 = vset.pattern.permute.xlu0 1
  %212 = vperm.xlu0 %211, %v60
  %v213 = vpop.permute.xlu0 %212
  %215 = vset.pattern.permute.xlu0 1
  %216 = vperm.xlu0 %215, %v61
  %v217 = vpop.permute.xlu0 %216
  %219 = vset.pattern.permute.xlu0 1
  %220 = vperm.xlu0 %219, %v62
  %v221 = vpop.permute.xlu0 %220
  %223 = vset.pattern.permute.xlu0 1
  %224 = vperm.xlu0 %223, %v63
  %v225 = vpop.permute.xlu0 %224
  %227 = vset.pattern.permute.xlu0 1
  %228 = vperm.xlu0 %227, %v64
  %v229 = vpop.permute.xlu0 %228
  %231 = vset.pattern.permute.xlu0 1
  %232 = vperm.xlu0 %231, %v65
  %v233 = vpop.permute.xlu0 %232
  %235 = vset.pattern.permute.xlu0 1
  %236 = vperm.xlu0 %235, %v66
  %v237 = vpop.permute.xlu0 %236
  %239 = vset.pattern.permute.xlu0 1
  %240 = vperm.xlu0 %239, %v67
  %v241 = vpop.permute.xlu0 %240
  %243 = vset.pattern.permute.xlu0 1
  %244 = vperm.xlu0 %243, %v68
  %v245 = vpop.permute.xlu0 %244
  %v247 = vperm.slane %v69, 1
  %v248 = vsub.f32 %v185, %v247
  %v249 = vsub.f32 %v189, %v247
  %v250 = vsub.f32 %v193, %v247
  %v251 = vsub.f32 %v197, %v247
  %v252 = vsub.f32 %v201, %v247
  %v253 = vsub.f32 %v205, %v247
  %v254 = vsub.f32 %v209, %v247
  %v255 = vsub.f32 %v213, %v247
  %v256 = vsub.f32 %v217, %v247
  %v257 = vsub.f32 %v221, %v247
  %v258 = vsub.f32 %v225, %v247
  %v259 = vsub.f32 %v229, %v247
  %v260 = vsub.f32 %v233, %v247
  %v261 = vsub.f32 %v237, %v247
  %v262 = vsub.f32 %v241, %v247
  %v263 = vsub.f32 %v245, %v247
  %v264 = vmul.f32 %v248, %v248
  %v265 = vmul.f32 %v249, %v249
  %v266 = vmul.f32 %v250, %v250
  %v267 = vmul.f32 %v251, %v251
  %v268 = vmul.f32 %v252, %v252
  %v269 = vmul.f32 %v253, %v253
  %v270 = vmul.f32 %v254, %v254
  %v271 = vmul.f32 %v255, %v255
  %v272 = vmul.f32 %v256, %v256
  %v273 = vmul.f32 %v257, %v257
  %v274 = vmul.f32 %v258, %v258
  %v275 = vmul.f32 %v259, %v259
  %v276 = vmul.f32 %v260, %v260
  %v277 = vmul.f32 %v261, %v261
  %v278 = vmul.f32 %v262, %v262
  %v279 = vmul.f32 %v263, %v263
  %v280 = vadd.f32 %v167, %v264
  %v281 = vadd.f32 %v168, %v265
  %v282 = vadd.f32 %v169, %v266
  %v283 = vadd.f32 %v170, %v267
  %v284 = vadd.f32 %v171, %v268
  %v285 = vadd.f32 %v172, %v269
  %v286 = vadd.f32 %v173, %v270
  %v287 = vadd.f32 %v174, %v271
  %v288 = vadd.f32 %v175, %v272
  %v289 = vadd.f32 %v176, %v273
  %v290 = vadd.f32 %v177, %v274
  %v291 = vadd.f32 %v178, %v275
  %v292 = vadd.f32 %v179, %v276
  %v293 = vadd.f32 %v180, %v277
  %v294 = vadd.f32 %v181, %v278
  %v295 = vadd.f32 %v182, %v279
  %296 = vset.pattern.permute.xlu0 2
  %297 = vperm.xlu0 %296, %v53
  %v298 = vpop.permute.xlu0 %297
  %300 = vset.pattern.permute.xlu0 2
  %301 = vperm.xlu0 %300, %v54
  %v302 = vpop.permute.xlu0 %301
  %304 = vset.pattern.permute.xlu0 2
  %305 = vperm.xlu0 %304, %v55
  %v306 = vpop.permute.xlu0 %305
  %308 = vset.pattern.permute.xlu0 2
  %309 = vperm.xlu0 %308, %v56
  %v310 = vpop.permute.xlu0 %309
  %312 = vset.pattern.permute.xlu0 2
  %313 = vperm.xlu0 %312, %v57
  %v314 = vpop.permute.xlu0 %313
  %316 = vset.pattern.permute.xlu0 2
  %317 = vperm.xlu0 %316, %v58
  %v318 = vpop.permute.xlu0 %317
  %320 = vset.pattern.permute.xlu0 2
  %321 = vperm.xlu0 %320, %v59
  %v322 = vpop.permute.xlu0 %321
  %324 = vset.pattern.permute.xlu0 2
  %325 = vperm.xlu0 %324, %v60
  %v326 = vpop.permute.xlu0 %325
  %328 = vset.pattern.permute.xlu0 2
  %329 = vperm.xlu0 %328, %v61
  %v330 = vpop.permute.xlu0 %329
  %332 = vset.pattern.permute.xlu0 2
  %333 = vperm.xlu0 %332, %v62
  %v334 = vpop.permute.xlu0 %333
  %336 = vset.pattern.permute.xlu0 2
  %337 = vperm.xlu0 %336, %v63
  %v338 = vpop.permute.xlu0 %337
  %340 = vset.pattern.permute.xlu0 2
  %341 = vperm.xlu0 %340, %v64
  %v342 = vpop.permute.xlu0 %341
  %344 = vset.pattern.permute.xlu0 2
  %345 = vperm.xlu0 %344, %v65
  %v346 = vpop.permute.xlu0 %345
  %348 = vset.pattern.permute.xlu0 2
  %349 = vperm.xlu0 %348, %v66
  %v350 = vpop.permute.xlu0 %349
  %352 = vset.pattern.permute.xlu0 2
  %353 = vperm.xlu0 %352, %v67
  %v354 = vpop.permute.xlu0 %353
  %356 = vset.pattern.permute.xlu0 2
  %357 = vperm.xlu0 %356, %v68
  %v358 = vpop.permute.xlu0 %357
  %v360 = vperm.slane %v69, 2
  %v361 = vsub.f32 %v298, %v360
  %v362 = vsub.f32 %v302, %v360
  %v363 = vsub.f32 %v306, %v360
  %v364 = vsub.f32 %v310, %v360
  %v365 = vsub.f32 %v314, %v360
  %v366 = vsub.f32 %v318, %v360
  %v367 = vsub.f32 %v322, %v360
  %v368 = vsub.f32 %v326, %v360
  %v369 = vsub.f32 %v330, %v360
  %v370 = vsub.f32 %v334, %v360
  %v371 = vsub.f32 %v338, %v360
  %v372 = vsub.f32 %v342, %v360
  %v373 = vsub.f32 %v346, %v360
  %v374 = vsub.f32 %v350, %v360
  %v375 = vsub.f32 %v354, %v360
  %v376 = vsub.f32 %v358, %v360
  %v377 = vmul.f32 %v361, %v361
  %v378 = vmul.f32 %v362, %v362
  %v379 = vmul.f32 %v363, %v363
  %v380 = vmul.f32 %v364, %v364
  %v381 = vmul.f32 %v365, %v365
  %v382 = vmul.f32 %v366, %v366
  %v383 = vmul.f32 %v367, %v367
  %v384 = vmul.f32 %v368, %v368
  %v385 = vmul.f32 %v369, %v369
  %v386 = vmul.f32 %v370, %v370
  %v387 = vmul.f32 %v371, %v371
  %v388 = vmul.f32 %v372, %v372
  %v389 = vmul.f32 %v373, %v373
  %v390 = vmul.f32 %v374, %v374
  %v391 = vmul.f32 %v375, %v375
  %v392 = vmul.f32 %v376, %v376
  %v393 = vadd.f32 %v280, %v377
  %v394 = vadd.f32 %v281, %v378
  %v395 = vadd.f32 %v282, %v379
  %v396 = vadd.f32 %v283, %v380
  %v397 = vadd.f32 %v284, %v381
  %v398 = vadd.f32 %v285, %v382
  %v399 = vadd.f32 %v286, %v383
  %v400 = vadd.f32 %v287, %v384
  %v401 = vadd.f32 %v288, %v385
  %v402 = vadd.f32 %v289, %v386
  %v403 = vadd.f32 %v290, %v387
  %v404 = vadd.f32 %v291, %v388
  %v405 = vadd.f32 %v292, %v389
  %v406 = vadd.f32 %v293, %v390
  %v407 = vadd.f32 %v294, %v391
  %v408 = vadd.f32 %v295, %v392
  %v409 = vld [vmem:[%s2] sm:$0x1]
  %v410 = vmin.f32 %v393, %v397
  %v411 = vmin.f32 %v394, %v398
  %v412 = vmin.f32 %v395, %v399
  %v413 = vmin.f32 %v396, %v400
  %v414 = vmin.f32 %v410, %v401
  %v415 = vmin.f32 %v411, %v402
  %v416 = vmin.f32 %v412, %v403
  %v417 = vmin.f32 %v413, %v404
  %v418 = vmin.f32 %v414, %v405
  %v419 = vmin.f32 %v415, %v406
  %v420 = vmin.f32 %v416, %v407
  %v421 = vmin.f32 %v417, %v408
  %v422 = vmin.f32 %v418, %v419
  %v423 = vmin.f32 %v420, %v421
  %v424 = vmin.f32 %v422, %v423
  %v425 = vrot.slane %v424, 4
  %v426 = vmin.f32 %v424, %v425
  %v427 = vrot.slane %v426, 2
  %v428 = vmin.f32 %v426, %v427
  %v429 = vrot.slane %v428, 1
  %v430 = vmin.f32 %v428, %v429
  %vm431 = vcmask 1040384
  %v432 = vsel %vm431, %v430, 0.0
  %433 = vadd.xlane.f32.xlu0 %v432
  %v434 = vpop.xlane.xlu0 %433
  %v435 = vrot.slane %v434, 4
  %v436 = vadd.f32 %v434, %v435
  %v437 = vrot.slane %v436, 2
  %v438 = vadd.f32 %v436, %v437
  %v439 = vrot.slane %v438, 1
  %v440 = vadd.f32 %v438, %v439
  %s441 = vtos %v440
  %v442 = vstv %s441
  %v443 = vadd.f32 %v409, %v442
  %vm444 = vcmask 0
  %445 = vst.msk [vmem:[%s2] sm:$0x1] %vm444, %v443
  %v446 = vld [vmem:[#allocation2] sm:$0xff]
  %v447 = vld [vmem:[#allocation2 + $0x8] sm:$0xff]
  %v448 = vld [vmem:[#allocation2 + $0x10] sm:$0xff]
  %v449 = vld [vmem:[#allocation2 + $0x18] sm:$0xff]
  %v450 = vld [vmem:[#allocation2 + $0x20] sm:$0xff]
  %v451 = vld [vmem:[#allocation2 + $0x28] sm:$0xff]
  %v452 = vld [vmem:[#allocation2 + $0x30] sm:$0xff]
  %v453 = vld [vmem:[#allocation2 + $0x38] sm:$0xff]
  %v454 = vld [vmem:[#allocation2 + $0x40] sm:$0xff]
  %v455 = vld [vmem:[#allocation2 + $0x48] sm:$0xff]
  %v456 = vld [vmem:[#allocation2 + $0x50] sm:$0xff]
  %v457 = vld [vmem:[#allocation2 + $0x58] sm:$0xff]
  %v458 = vld [vmem:[#allocation2 + $0x60] sm:$0xff]
  %v459 = vld [vmem:[#allocation2 + $0x68] sm:$0xff]
  %v460 = vld [vmem:[#allocation2 + $0x70] sm:$0xff]
  %v461 = vld [vmem:[#allocation2 + $0x78] sm:$0xff]
  %462 = vmin.xlane.f32.xlu0 %v393
  %v463 = vpop.xlane.xlu0 %462
  %464 = vmin.xlane.f32.xlu0 %v394
  %v465 = vpop.xlane.xlu0 %464
  %466 = vmin.xlane.f32.xlu0 %v395
  %v467 = vpop.xlane.xlu0 %466
  %468 = vmin.xlane.f32.xlu0 %v396
  %v469 = vpop.xlane.xlu0 %468
  %470 = vmin.xlane.f32.xlu0 %v397
  %v471 = vpop.xlane.xlu0 %470
  %472 = vmin.xlane.f32.xlu0 %v398
  %v473 = vpop.xlane.xlu0 %472
  %474 = vmin.xlane.f32.xlu0 %v399
  %v475 = vpop.xlane.xlu0 %474
  %476 = vmin.xlane.f32.xlu0 %v400
  %v477 = vpop.xlane.xlu0 %476
  %478 = vmin.xlane.f32.xlu0 %v401
  %v479 = vpop.xlane.xlu0 %478
  %480 = vmin.xlane.f32.xlu0 %v402
  %v481 = vpop.xlane.xlu0 %480
  %482 = vmin.xlane.f32.xlu0 %v403
  %v483 = vpop.xlane.xlu0 %482
  %484 = vmin.xlane.f32.xlu0 %v404
  %v485 = vpop.xlane.xlu0 %484
  %486 = vmin.xlane.f32.xlu0 %v405
  %v487 = vpop.xlane.xlu0 %486
  %488 = vmin.xlane.f32.xlu0 %v406
  %v489 = vpop.xlane.xlu0 %488
  %490 = vmin.xlane.f32.xlu0 %v407
  %v491 = vpop.xlane.xlu0 %490
  %492 = vmin.xlane.f32.xlu0 %v408
  %v493 = vpop.xlane.xlu0 %492
  %v494 = vmin.f32 %v446, %v463
  %v495 = vmin.f32 %v447, %v465
  %v496 = vmin.f32 %v448, %v467
  %v497 = vmin.f32 %v449, %v469
  %v498 = vmin.f32 %v450, %v471
  %v499 = vmin.f32 %v451, %v473
  %v500 = vmin.f32 %v452, %v475
  %v501 = vmin.f32 %v453, %v477
  %v502 = vmin.f32 %v454, %v479
  %v503 = vmin.f32 %v455, %v481
  %v504 = vmin.f32 %v456, %v483
  %v505 = vmin.f32 %v457, %v485
  %v506 = vmin.f32 %v458, %v487
  %v507 = vmin.f32 %v459, %v489
  %v508 = vmin.f32 %v460, %v491
  %v509 = vmin.f32 %v461, %v493
  %vm510 = vcmask 7168
  %511 = vst.msk [vmem:[#allocation2] sm:$0xff] %vm510, %v494
  %512 = vst.msk [vmem:[#allocation2 + $0x8] sm:$0xff] %vm510, %v495
  %513 = vst.msk [vmem:[#allocation2 + $0x10] sm:$0xff] %vm510, %v496
  %514 = vst.msk [vmem:[#allocation2 + $0x18] sm:$0xff] %vm510, %v497
  %515 = vst.msk [vmem:[#allocation2 + $0x20] sm:$0xff] %vm510, %v498
  %516 = vst.msk [vmem:[#allocation2 + $0x28] sm:$0xff] %vm510, %v499
  %517 = vst.msk [vmem:[#allocation2 + $0x30] sm:$0xff] %vm510, %v500
  %518 = vst.msk [vmem:[#allocation2 + $0x38] sm:$0xff] %vm510, %v501
  %519 = vst.msk [vmem:[#allocation2 + $0x40] sm:$0xff] %vm510, %v502
  %520 = vst.msk [vmem:[#allocation2 + $0x48] sm:$0xff] %vm510, %v503
  %521 = vst.msk [vmem:[#allocation2 + $0x50] sm:$0xff] %vm510, %v504
  %522 = vst.msk [vmem:[#allocation2 + $0x58] sm:$0xff] %vm510, %v505
  %523 = vst.msk [vmem:[#allocation2 + $0x60] sm:$0xff] %vm510, %v506
  %524 = vst.msk [vmem:[#allocation2 + $0x68] sm:$0xff] %vm510, %v507
  %525 = vst.msk [vmem:[#allocation2 + $0x70] sm:$0xff] %vm510, %v508
  %526 = vst.msk [vmem:[#allocation2 + $0x78] sm:$0xff] %vm510, %v509
  %s527 = scalar_lea.vmem %s0, 128
  %v528 = vld [vmem:[%s527] sm:$0xff]
  %v529 = vld [vmem:[%s527 + $0x8] sm:$0xff]
  %v530 = vld [vmem:[%s527 + $0x10] sm:$0xff]
  %v531 = vld [vmem:[%s527 + $0x18] sm:$0xff]
  %v532 = vld [vmem:[%s527 + $0x20] sm:$0xff]
  %v533 = vld [vmem:[%s527 + $0x28] sm:$0xff]
  %v534 = vld [vmem:[%s527 + $0x30] sm:$0xff]
  %v535 = vld [vmem:[%s527 + $0x38] sm:$0xff]
  %v536 = vld [vmem:[%s527 + $0x40] sm:$0xff]
  %v537 = vld [vmem:[%s527 + $0x48] sm:$0xff]
  %v538 = vld [vmem:[%s527 + $0x50] sm:$0xff]
  %v539 = vld [vmem:[%s527 + $0x58] sm:$0xff]
  %v540 = vld [vmem:[%s527 + $0x60] sm:$0xff]
  %v541 = vld [vmem:[%s527 + $0x68] sm:$0xff]
  %v542 = vld [vmem:[%s527 + $0x70] sm:$0xff]
  %v543 = vld [vmem:[%s527 + $0x78] sm:$0xff]
  %s544 = scalar_lea.vmem %s1, 4
  %v545 = vld [vmem:[%s544] sm:$0x7]
  %547 = vset.pattern.permute.xlu0 0
  %548 = vperm.xlu0 %547, %v528
  %v549 = vpop.permute.xlu0 %548
  %552 = vset.pattern.permute.xlu0 0
  %553 = vperm.xlu0 %552, %v529
  %v554 = vpop.permute.xlu0 %553
  %557 = vset.pattern.permute.xlu0 0
  %558 = vperm.xlu0 %557, %v530
  %v559 = vpop.permute.xlu0 %558
  %562 = vset.pattern.permute.xlu0 0
  %563 = vperm.xlu0 %562, %v531
  %v564 = vpop.permute.xlu0 %563
  %567 = vset.pattern.permute.xlu0 0
  %568 = vperm.xlu0 %567, %v532
  %v569 = vpop.permute.xlu0 %568
  %572 = vset.pattern.permute.xlu0 0
  %573 = vperm.xlu0 %572, %v533
  %v574 = vpop.permute.xlu0 %573
  %577 = vset.pattern.permute.xlu0 0
  %578 = vperm.xlu0 %577, %v534
  %v579 = vpop.permute.xlu0 %578
  %582 = vset.pattern.permute.xlu0 0
  %583 = vperm.xlu0 %582, %v535
  %v584 = vpop.permute.xlu0 %583
  %587 = vset.pattern.permute.xlu0 0
  %588 = vperm.xlu0 %587, %v536
  %v589 = vpop.permute.xlu0 %588
  %592 = vset.pattern.permute.xlu0 0
  %593 = vperm.xlu0 %592, %v537
  %v594 = vpop.permute.xlu0 %593
  %597 = vset.pattern.permute.xlu0 0
  %598 = vperm.xlu0 %597, %v538
  %v599 = vpop.permute.xlu0 %598
  %602 = vset.pattern.permute.xlu0 0
  %603 = vperm.xlu0 %602, %v539
  %v604 = vpop.permute.xlu0 %603
  %607 = vset.pattern.permute.xlu0 0
  %608 = vperm.xlu0 %607, %v540
  %v609 = vpop.permute.xlu0 %608
  %612 = vset.pattern.permute.xlu0 0
  %613 = vperm.xlu0 %612, %v541
  %v614 = vpop.permute.xlu0 %613
  %617 = vset.pattern.permute.xlu0 0
  %618 = vperm.xlu0 %617, %v542
  %v619 = vpop.permute.xlu0 %618
  %622 = vset.pattern.permute.xlu0 0
  %623 = vperm.xlu0 %622, %v543
  %v624 = vpop.permute.xlu0 %623
  %v626 = vperm.slane %v545, 0
  %v627 = vsub.f32 %v549, %v626
  %v628 = vsub.f32 %v554, %v626
  %v629 = vsub.f32 %v559, %v626
  %v630 = vsub.f32 %v564, %v626
  %v631 = vsub.f32 %v569, %v626
  %v632 = vsub.f32 %v574, %v626
  %v633 = vsub.f32 %v579, %v626
  %v634 = vsub.f32 %v584, %v626
  %v635 = vsub.f32 %v589, %v626
  %v636 = vsub.f32 %v594, %v626
  %v637 = vsub.f32 %v599, %v626
  %v638 = vsub.f32 %v604, %v626
  %v639 = vsub.f32 %v609, %v626
  %v640 = vsub.f32 %v614, %v626
  %v641 = vsub.f32 %v619, %v626
  %v642 = vsub.f32 %v624, %v626
  %v643 = vmul.f32 %v627, %v627
  %v644 = vmul.f32 %v628, %v628
  %v645 = vmul.f32 %v629, %v629
  %v646 = vmul.f32 %v630, %v630
  %v647 = vmul.f32 %v631, %v631
  %v648 = vmul.f32 %v632, %v632
  %v649 = vmul.f32 %v633, %v633
  %v650 = vmul.f32 %v634, %v634
  %v651 = vmul.f32 %v635, %v635
  %v652 = vmul.f32 %v636, %v636
  %v653 = vmul.f32 %v637, %v637
  %v654 = vmul.f32 %v638, %v638
  %v655 = vmul.f32 %v639, %v639
  %v656 = vmul.f32 %v640, %v640
  %v657 = vmul.f32 %v641, %v641
  %v658 = vmul.f32 %v642, %v642
  %659 = vset.pattern.permute.xlu0 1
  %660 = vperm.xlu0 %659, %v528
  %v661 = vpop.permute.xlu0 %660
  %663 = vset.pattern.permute.xlu0 1
  %664 = vperm.xlu0 %663, %v529
  %v665 = vpop.permute.xlu0 %664
  %667 = vset.pattern.permute.xlu0 1
  %668 = vperm.xlu0 %667, %v530
  %v669 = vpop.permute.xlu0 %668
  %671 = vset.pattern.permute.xlu0 1
  %672 = vperm.xlu0 %671, %v531
  %v673 = vpop.permute.xlu0 %672
  %675 = vset.pattern.permute.xlu0 1
  %676 = vperm.xlu0 %675, %v532
  %v677 = vpop.permute.xlu0 %676
  %679 = vset.pattern.permute.xlu0 1
  %680 = vperm.xlu0 %679, %v533
  %v681 = vpop.permute.xlu0 %680
  %683 = vset.pattern.permute.xlu0 1
  %684 = vperm.xlu0 %683, %v534
  %v685 = vpop.permute.xlu0 %684
  %687 = vset.pattern.permute.xlu0 1
  %688 = vperm.xlu0 %687, %v535
  %v689 = vpop.permute.xlu0 %688
  %691 = vset.pattern.permute.xlu0 1
  %692 = vperm.xlu0 %691, %v536
  %v693 = vpop.permute.xlu0 %692
  %695 = vset.pattern.permute.xlu0 1
  %696 = vperm.xlu0 %695, %v537
  %v697 = vpop.permute.xlu0 %696
  %699 = vset.pattern.permute.xlu0 1
  %700 = vperm.xlu0 %699, %v538
  %v701 = vpop.permute.xlu0 %700
  %703 = vset.pattern.permute.xlu0 1
  %704 = vperm.xlu0 %703, %v539
  %v705 = vpop.permute.xlu0 %704
  %707 = vset.pattern.permute.xlu0 1
  %708 = vperm.xlu0 %707, %v540
  %v709 = vpop.permute.xlu0 %708
  %711 = vset.pattern.permute.xlu0 1
  %712 = vperm.xlu0 %711, %v541
  %v713 = vpop.permute.xlu0 %712
  %715 = vset.pattern.permute.xlu0 1
  %716 = vperm.xlu0 %715, %v542
  %v717 = vpop.permute.xlu0 %716
  %719 = vset.pattern.permute.xlu0 1
  %720 = vperm.xlu0 %719, %v543
  %v721 = vpop.permute.xlu0 %720
  %v723 = vperm.slane %v545, 1
  %v724 = vsub.f32 %v661, %v723
  %v725 = vsub.f32 %v665, %v723
  %v726 = vsub.f32 %v669, %v723
  %v727 = vsub.f32 %v673, %v723
  %v728 = vsub.f32 %v677, %v723
  %v729 = vsub.f32 %v681, %v723
  %v730 = vsub.f32 %v685, %v723
  %v731 = vsub.f32 %v689, %v723
  %v732 = vsub.f32 %v693, %v723
  %v733 = vsub.f32 %v697, %v723
  %v734 = vsub.f32 %v701, %v723
  %v735 = vsub.f32 %v705, %v723
  %v736 = vsub.f32 %v709, %v723
  %v737 = vsub.f32 %v713, %v723
  %v738 = vsub.f32 %v717, %v723
  %v739 = vsub.f32 %v721, %v723
  %v740 = vmul.f32 %v724, %v724
  %v741 = vmul.f32 %v725, %v725
  %v742 = vmul.f32 %v726, %v726
  %v743 = vmul.f32 %v727, %v727
  %v744 = vmul.f32 %v728, %v728
  %v745 = vmul.f32 %v729, %v729
  %v746 = vmul.f32 %v730, %v730
  %v747 = vmul.f32 %v731, %v731
  %v748 = vmul.f32 %v732, %v732
  %v749 = vmul.f32 %v733, %v733
  %v750 = vmul.f32 %v734, %v734
  %v751 = vmul.f32 %v735, %v735
  %v752 = vmul.f32 %v736, %v736
  %v753 = vmul.f32 %v737, %v737
  %v754 = vmul.f32 %v738, %v738
  %v755 = vmul.f32 %v739, %v739
  %v756 = vadd.f32 %v643, %v740
  %v757 = vadd.f32 %v644, %v741
  %v758 = vadd.f32 %v645, %v742
  %v759 = vadd.f32 %v646, %v743
  %v760 = vadd.f32 %v647, %v744
  %v761 = vadd.f32 %v648, %v745
  %v762 = vadd.f32 %v649, %v746
  %v763 = vadd.f32 %v650, %v747
  %v764 = vadd.f32 %v651, %v748
  %v765 = vadd.f32 %v652, %v749
  %v766 = vadd.f32 %v653, %v750
  %v767 = vadd.f32 %v654, %v751
  %v768 = vadd.f32 %v655, %v752
  %v769 = vadd.f32 %v656, %v753
  %v770 = vadd.f32 %v657, %v754
  %v771 = vadd.f32 %v658, %v755
  %772 = vset.pattern.permute.xlu0 2
  %773 = vperm.xlu0 %772, %v528
  %v774 = vpop.permute.xlu0 %773
  %776 = vset.pattern.permute.xlu0 2
  %777 = vperm.xlu0 %776, %v529
  %v778 = vpop.permute.xlu0 %777
  %780 = vset.pattern.permute.xlu0 2
  %781 = vperm.xlu0 %780, %v530
  %v782 = vpop.permute.xlu0 %781
  %784 = vset.pattern.permute.xlu0 2
  %785 = vperm.xlu0 %784, %v531
  %v786 = vpop.permute.xlu0 %785
  %788 = vset.pattern.permute.xlu0 2
  %789 = vperm.xlu0 %788, %v532
  %v790 = vpop.permute.xlu0 %789
  %792 = vset.pattern.permute.xlu0 2
  %793 = vperm.xlu0 %792, %v533
  %v794 = vpop.permute.xlu0 %793
  %796 = vset.pattern.permute.xlu0 2
  %797 = vperm.xlu0 %796, %v534
  %v798 = vpop.permute.xlu0 %797
  %800 = vset.pattern.permute.xlu0 2
  %801 = vperm.xlu0 %800, %v535
  %v802 = vpop.permute.xlu0 %801
  %804 = vset.pattern.permute.xlu0 2
  %805 = vperm.xlu0 %804, %v536
  %v806 = vpop.permute.xlu0 %805
  %808 = vset.pattern.permute.xlu0 2
  %809 = vperm.xlu0 %808, %v537
  %v810 = vpop.permute.xlu0 %809
  %812 = vset.pattern.permute.xlu0 2
  %813 = vperm.xlu0 %812, %v538
  %v814 = vpop.permute.xlu0 %813
  %816 = vset.pattern.permute.xlu0 2
  %817 = vperm.xlu0 %816, %v539
  %v818 = vpop.permute.xlu0 %817
  %820 = vset.pattern.permute.xlu0 2
  %821 = vperm.xlu0 %820, %v540
  %v822 = vpop.permute.xlu0 %821
  %824 = vset.pattern.permute.xlu0 2
  %825 = vperm.xlu0 %824, %v541
  %v826 = vpop.permute.xlu0 %825
  %828 = vset.pattern.permute.xlu0 2
  %829 = vperm.xlu0 %828, %v542
  %v830 = vpop.permute.xlu0 %829
  %832 = vset.pattern.permute.xlu0 2
  %833 = vperm.xlu0 %832, %v543
  %v834 = vpop.permute.xlu0 %833
  %v836 = vperm.slane %v545, 2
  %v837 = vsub.f32 %v774, %v836
  %v838 = vsub.f32 %v778, %v836
  %v839 = vsub.f32 %v782, %v836
  %v840 = vsub.f32 %v786, %v836
  %v841 = vsub.f32 %v790, %v836
  %v842 = vsub.f32 %v794, %v836
  %v843 = vsub.f32 %v798, %v836
  %v844 = vsub.f32 %v802, %v836
  %v845 = vsub.f32 %v806, %v836
  %v846 = vsub.f32 %v810, %v836
  %v847 = vsub.f32 %v814, %v836
  %v848 = vsub.f32 %v818, %v836
  %v849 = vsub.f32 %v822, %v836
  %v850 = vsub.f32 %v826, %v836
  %v851 = vsub.f32 %v830, %v836
  %v852 = vsub.f32 %v834, %v836
  %v853 = vmul.f32 %v837, %v837
  %v854 = vmul.f32 %v838, %v838
  %v855 = vmul.f32 %v839, %v839
  %v856 = vmul.f32 %v840, %v840
  %v857 = vmul.f32 %v841, %v841
  %v858 = vmul.f32 %v842, %v842
  %v859 = vmul.f32 %v843, %v843
  %v860 = vmul.f32 %v844, %v844
  %v861 = vmul.f32 %v845, %v845
  %v862 = vmul.f32 %v846, %v846
  %v863 = vmul.f32 %v847, %v847
  %v864 = vmul.f32 %v848, %v848
  %v865 = vmul.f32 %v849, %v849
  %v866 = vmul.f32 %v850, %v850
  %v867 = vmul.f32 %v851, %v851
  %v868 = vmul.f32 %v852, %v852
  %v869 = vadd.f32 %v756, %v853
  %v870 = vadd.f32 %v757, %v854
  %v871 = vadd.f32 %v758, %v855
  %v872 = vadd.f32 %v759, %v856
  %v873 = vadd.f32 %v760, %v857
  %v874 = vadd.f32 %v761, %v858
  %v875 = vadd.f32 %v762, %v859
  %v876 = vadd.f32 %v763, %v860
  %v877 = vadd.f32 %v764, %v861
  %v878 = vadd.f32 %v765, %v862
  %v879 = vadd.f32 %v766, %v863
  %v880 = vadd.f32 %v767, %v864
  %v881 = vadd.f32 %v768, %v865
  %v882 = vadd.f32 %v769, %v866
  %v883 = vadd.f32 %v770, %v867
  %v884 = vadd.f32 %v771, %v868
  %s885 = scalar_lea.vmem %s2, 1
  %v886 = vld [vmem:[%s885] sm:$0x1]
  %v887 = vmin.f32 %v869, %v873
  %v888 = vmin.f32 %v870, %v874
  %v889 = vmin.f32 %v871, %v875
  %v890 = vmin.f32 %v872, %v876
  %v891 = vmin.f32 %v887, %v877
  %v892 = vmin.f32 %v888, %v878
  %v893 = vmin.f32 %v889, %v879
  %v894 = vmin.f32 %v890, %v880
  %v895 = vmin.f32 %v891, %v881
  %v896 = vmin.f32 %v892, %v882
  %v897 = vmin.f32 %v893, %v883
  %v898 = vmin.f32 %v894, %v884
  %v899 = vmin.f32 %v895, %v896
  %v900 = vmin.f32 %v897, %v898
  %v901 = vmin.f32 %v899, %v900
  %v902 = vrot.slane %v901, 4
  %v903 = vmin.f32 %v901, %v902
  %v904 = vrot.slane %v903, 2
  %v905 = vmin.f32 %v903, %v904
  %v906 = vrot.slane %v905, 1
  %v907 = vmin.f32 %v905, %v906
  %v908 = vsel %vm431, %v907, 0.0
  %909 = vadd.xlane.f32.xlu0 %v908
  %v910 = vpop.xlane.xlu0 %909
  %v911 = vrot.slane %v910, 4
  %v912 = vadd.f32 %v910, %v911
  %v913 = vrot.slane %v912, 2
  %v914 = vadd.f32 %v912, %v913
  %v915 = vrot.slane %v914, 1
  %v916 = vadd.f32 %v914, %v915
  %s917 = vtos %v916
  %v918 = vstv %s917
  %v919 = vadd.f32 %v886, %v918
  %920 = vst.msk [vmem:[%s885] sm:$0x1] %vm444, %v919
  %s921 = scalar_lea.vmem [#allocation2], 128
  %v922 = vld [vmem:[%s921] sm:$0xff]
  %v923 = vld [vmem:[%s921 + $0x8] sm:$0xff]
  %v924 = vld [vmem:[%s921 + $0x10] sm:$0xff]
  %v925 = vld [vmem:[%s921 + $0x18] sm:$0xff]
  %v926 = vld [vmem:[%s921 + $0x20] sm:$0xff]
  %v927 = vld [vmem:[%s921 + $0x28] sm:$0xff]
  %v928 = vld [vmem:[%s921 + $0x30] sm:$0xff]
  %v929 = vld [vmem:[%s921 + $0x38] sm:$0xff]
  %v930 = vld [vmem:[%s921 + $0x40] sm:$0xff]
  %v931 = vld [vmem:[%s921 + $0x48] sm:$0xff]
  %v932 = vld [vmem:[%s921 + $0x50] sm:$0xff]
  %v933 = vld [vmem:[%s921 + $0x58] sm:$0xff]
  %v934 = vld [vmem:[%s921 + $0x60] sm:$0xff]
  %v935 = vld [vmem:[%s921 + $0x68] sm:$0xff]
  %v936 = vld [vmem:[%s921 + $0x70] sm:$0xff]
  %v937 = vld [vmem:[%s921 + $0x78] sm:$0xff]
  %938 = vmin.xlane.f32.xlu0 %v869
  %v939 = vpop.xlane.xlu0 %938
  %940 = vmin.xlane.f32.xlu0 %v870
  %v941 = vpop.xlane.xlu0 %940
  %942 = vmin.xlane.f32.xlu0 %v871
  %v943 = vpop.xlane.xlu0 %942
  %944 = vmin.xlane.f32.xlu0 %v872
  %v945 = vpop.xlane.xlu0 %944
  %946 = vmin.xlane.f32.xlu0 %v873
  %v947 = vpop.xlane.xlu0 %946
  %948 = vmin.xlane.f32.xlu0 %v874
  %v949 = vpop.xlane.xlu0 %948
  %950 = vmin.xlane.f32.xlu0 %v875
  %v951 = vpop.xlane.xlu0 %950
  %952 = vmin.xlane.f32.xlu0 %v876
  %v953 = vpop.xlane.xlu0 %952
  %954 = vmin.xlane.f32.xlu0 %v877
  %v955 = vpop.xlane.xlu0 %954
  %956 = vmin.xlane.f32.xlu0 %v878
  %v957 = vpop.xlane.xlu0 %956
  %958 = vmin.xlane.f32.xlu0 %v879
  %v959 = vpop.xlane.xlu0 %958
  %960 = vmin.xlane.f32.xlu0 %v880
  %v961 = vpop.xlane.xlu0 %960
  %962 = vmin.xlane.f32.xlu0 %v881
  %v963 = vpop.xlane.xlu0 %962
  %964 = vmin.xlane.f32.xlu0 %v882
  %v965 = vpop.xlane.xlu0 %964
  %966 = vmin.xlane.f32.xlu0 %v883
  %v967 = vpop.xlane.xlu0 %966
  %968 = vmin.xlane.f32.xlu0 %v884
  %v969 = vpop.xlane.xlu0 %968
  %v970 = vmin.f32 %v922, %v939
  %v971 = vmin.f32 %v923, %v941
  %v972 = vmin.f32 %v924, %v943
  %v973 = vmin.f32 %v925, %v945
  %v974 = vmin.f32 %v926, %v947
  %v975 = vmin.f32 %v927, %v949
  %v976 = vmin.f32 %v928, %v951
  %v977 = vmin.f32 %v929, %v953
  %v978 = vmin.f32 %v930, %v955
  %v979 = vmin.f32 %v931, %v957
  %v980 = vmin.f32 %v932, %v959
  %v981 = vmin.f32 %v933, %v961
  %v982 = vmin.f32 %v934, %v963
  %v983 = vmin.f32 %v935, %v965
  %v984 = vmin.f32 %v936, %v967
  %v985 = vmin.f32 %v937, %v969
  %986 = vst.msk [vmem:[%s921] sm:$0xff] %vm510, %v970
  %987 = vst.msk [vmem:[%s921 + $0x8] sm:$0xff] %vm510, %v971
  %988 = vst.msk [vmem:[%s921 + $0x10] sm:$0xff] %vm510, %v972
  %989 = vst.msk [vmem:[%s921 + $0x18] sm:$0xff] %vm510, %v973
  %990 = vst.msk [vmem:[%s921 + $0x20] sm:$0xff] %vm510, %v974
  %991 = vst.msk [vmem:[%s921 + $0x28] sm:$0xff] %vm510, %v975
  %992 = vst.msk [vmem:[%s921 + $0x30] sm:$0xff] %vm510, %v976
  %993 = vst.msk [vmem:[%s921 + $0x38] sm:$0xff] %vm510, %v977
  %994 = vst.msk [vmem:[%s921 + $0x40] sm:$0xff] %vm510, %v978
  %995 = vst.msk [vmem:[%s921 + $0x48] sm:$0xff] %vm510, %v979
  %996 = vst.msk [vmem:[%s921 + $0x50] sm:$0xff] %vm510, %v980
  %997 = vst.msk [vmem:[%s921 + $0x58] sm:$0xff] %vm510, %v981
  %998 = vst.msk [vmem:[%s921 + $0x60] sm:$0xff] %vm510, %v982
  %999 = vst.msk [vmem:[%s921 + $0x68] sm:$0xff] %vm510, %v983
  %1000 = vst.msk [vmem:[%s921 + $0x70] sm:$0xff] %vm510, %v984
  %1001 = vst.msk [vmem:[%s921 + $0x78] sm:$0xff] %vm510, %v985
  // Predicated region
  $region14: #{chamfer_loss.1} parent=0 // pred_check
    %p1002 = pneg %p13
  $region15: #{chamfer_loss.1} parent=0 // pred_check_branch
    %1004 = sbr.rel (%p1002) target = $region17
  $region16: #{chamfer_loss.1} parent=0 // pred_region
    %v1005 = vld [vmem:[#allocation2] sm:$0xff]
    %v1006 = vld [vmem:[#allocation2 + $0x8] sm:$0xff]
    %v1007 = vld [vmem:[#allocation2 + $0x10] sm:$0xff]
    %v1008 = vld [vmem:[#allocation2 + $0x18] sm:$0xff]
    %v1009 = vld [vmem:[#allocation2 + $0x20] sm:$0xff]
    %v1010 = vld [vmem:[#allocation2 + $0x28] sm:$0xff]
    %v1011 = vld [vmem:[#allocation2 + $0x30] sm:$0xff]
    %v1012 = vld [vmem:[#allocation2 + $0x38] sm:$0xff]
    %v1013 = vld [vmem:[#allocation2 + $0x40] sm:$0xff]
    %v1014 = vld [vmem:[#allocation2 + $0x48] sm:$0xff]
    %v1015 = vld [vmem:[#allocation2 + $0x50] sm:$0xff]
    %v1016 = vld [vmem:[#allocation2 + $0x58] sm:$0xff]
    %v1017 = vld [vmem:[#allocation2 + $0x60] sm:$0xff]
    %v1018 = vld [vmem:[#allocation2 + $0x68] sm:$0xff]
    %v1019 = vld [vmem:[#allocation2 + $0x70] sm:$0xff]
    %v1020 = vld [vmem:[#allocation2 + $0x78] sm:$0xff]
    %v1021 = vsel %vm510, %v1005, 0.0
    %v1022 = vsel %vm510, %v1006, 0.0
    %v1023 = vadd.f32 %v1021, %v1022
    %v1024 = vsel %vm510, %v1007, 0.0
    %v1025 = vadd.f32 %v1023, %v1024
    %v1026 = vsel %vm510, %v1008, 0.0
    %v1027 = vadd.f32 %v1025, %v1026
    %v1028 = vsel %vm510, %v1009, 0.0
    %v1029 = vadd.f32 %v1027, %v1028
    %v1030 = vsel %vm510, %v1010, 0.0
    %v1031 = vadd.f32 %v1029, %v1030
    %v1032 = vsel %vm510, %v1011, 0.0
    %v1033 = vadd.f32 %v1031, %v1032
    %v1034 = vsel %vm510, %v1012, 0.0
    %v1035 = vadd.f32 %v1033, %v1034
    %v1036 = vsel %vm510, %v1013, 0.0
    %v1037 = vadd.f32 %v1035, %v1036
    %v1038 = vsel %vm510, %v1014, 0.0
    %v1039 = vadd.f32 %v1037, %v1038
    %v1040 = vsel %vm510, %v1015, 0.0
    %v1041 = vadd.f32 %v1039, %v1040
    %v1042 = vsel %vm510, %v1016, 0.0
    %v1043 = vadd.f32 %v1041, %v1042
    %v1044 = vsel %vm510, %v1017, 0.0
    %v1045 = vadd.f32 %v1043, %v1044
    %v1046 = vsel %vm510, %v1018, 0.0
    %v1047 = vadd.f32 %v1045, %v1046
    %v1048 = vsel %vm510, %v1019, 0.0
    %v1049 = vadd.f32 %v1047, %v1048
    %v1050 = vsel %vm510, %v1020, 0.0
    %v1051 = vadd.f32 %v1049, %v1050
    %1052 = vadd.xlane.f32.xlu0 %v1051
    %v1053 = vpop.xlane.xlu0 %1052
    %v1054 = vrot.slane %v1053, 4
    %v1055 = vadd.f32 %v1053, %v1054
    %v1056 = vrot.slane %v1055, 2
    %v1057 = vadd.f32 %v1055, %v1056
    %v1058 = vrot.slane %v1057, 1
    %v1059 = vadd.f32 %v1057, %v1058
    %s1060 = vtos %v1059
    %v1061 = vstv %s1060
    %1062 = vst.msk [vmem:[%s3] sm:$0x1] %vm444, %v1061
    %v1063 = vld [vmem:[%s921] sm:$0xff]
    %v1064 = vld [vmem:[%s921 + $0x8] sm:$0xff]
    %v1065 = vld [vmem:[%s921 + $0x10] sm:$0xff]
    %v1066 = vld [vmem:[%s921 + $0x18] sm:$0xff]
    %v1067 = vld [vmem:[%s921 + $0x20] sm:$0xff]
    %v1068 = vld [vmem:[%s921 + $0x28] sm:$0xff]
    %v1069 = vld [vmem:[%s921 + $0x30] sm:$0xff]
    %v1070 = vld [vmem:[%s921 + $0x38] sm:$0xff]
    %v1071 = vld [vmem:[%s921 + $0x40] sm:$0xff]
    %v1072 = vld [vmem:[%s921 + $0x48] sm:$0xff]
    %v1073 = vld [vmem:[%s921 + $0x50] sm:$0xff]
    %v1074 = vld [vmem:[%s921 + $0x58] sm:$0xff]
    %v1075 = vld [vmem:[%s921 + $0x60] sm:$0xff]
    %v1076 = vld [vmem:[%s921 + $0x68] sm:$0xff]
    %v1077 = vld [vmem:[%s921 + $0x70] sm:$0xff]
    %v1078 = vld [vmem:[%s921 + $0x78] sm:$0xff]
    %v1079 = vsel %vm510, %v1063, 0.0
    %v1080 = vsel %vm510, %v1064, 0.0
    %v1081 = vadd.f32 %v1079, %v1080
    %v1082 = vsel %vm510, %v1065, 0.0
    %v1083 = vadd.f32 %v1081, %v1082
    %v1084 = vsel %vm510, %v1066, 0.0
    %v1085 = vadd.f32 %v1083, %v1084
    %v1086 = vsel %vm510, %v1067, 0.0
    %v1087 = vadd.f32 %v1085, %v1086
    %v1088 = vsel %vm510, %v1068, 0.0
    %v1089 = vadd.f32 %v1087, %v1088
    %v1090 = vsel %vm510, %v1069, 0.0
    %v1091 = vadd.f32 %v1089, %v1090
    %v1092 = vsel %vm510, %v1070, 0.0
    %v1093 = vadd.f32 %v1091, %v1092
    %v1094 = vsel %vm510, %v1071, 0.0
    %v1095 = vadd.f32 %v1093, %v1094
    %v1096 = vsel %vm510, %v1072, 0.0
    %v1097 = vadd.f32 %v1095, %v1096
    %v1098 = vsel %vm510, %v1073, 0.0
    %v1099 = vadd.f32 %v1097, %v1098
    %v1100 = vsel %vm510, %v1074, 0.0
    %v1101 = vadd.f32 %v1099, %v1100
    %v1102 = vsel %vm510, %v1075, 0.0
    %v1103 = vadd.f32 %v1101, %v1102
    %v1104 = vsel %vm510, %v1076, 0.0
    %v1105 = vadd.f32 %v1103, %v1104
    %v1106 = vsel %vm510, %v1077, 0.0
    %v1107 = vadd.f32 %v1105, %v1106
    %v1108 = vsel %vm510, %v1078, 0.0
    %v1109 = vadd.f32 %v1107, %v1108
    %1110 = vadd.xlane.f32.xlu0 %v1109
    %v1111 = vpop.xlane.xlu0 %1110
    %v1112 = vrot.slane %v1111, 4
    %v1113 = vadd.f32 %v1111, %v1112
    %v1114 = vrot.slane %v1113, 2
    %v1115 = vadd.f32 %v1113, %v1114
    %v1116 = vrot.slane %v1115, 1
    %v1117 = vadd.f32 %v1115, %v1116
    %s1118 = vtos %v1117
    %v1119 = vstv %s1118
    %s1120 = scalar_lea.vmem %s3, 1
    %1121 = vst.msk [vmem:[%s1120] sm:$0x1] %vm444, %v1119
  $region17: #{chamfer_loss.1} parent=0 // pred_fallthru
    _
  // Predicated region
  $region18: #{chamfer_loss.1} parent=0 // pred_check
    _
  $region19: #{chamfer_loss.1} parent=0 // pred_check_branch
    %1123 = sbr.rel (0) target = $region21
  $region20: #{chamfer_loss.1} parent=0 // pred_region
    _
  $region21: #{chamfer_loss.1} parent=0 // pred_fallthru
    _
  // Predicated region
  $region22: #{chamfer_loss.1} parent=0 // pred_check
    _
  $region23: #{chamfer_loss.1} parent=0 // pred_check_branch
    %1125 = sbr.rel (0) target = $region25
  $region24: #{chamfer_loss.1} parent=0 // pred_region
    _
  $region25: #{chamfer_loss.1} parent=0 // pred_fallthru
    _
  // Predicated region
  $region26: #{chamfer_loss.1} parent=0 // pred_check
    _
  $region27: #{chamfer_loss.1} parent=0 // pred_check_branch
    %1127 = sbr.rel (0) target = $region29
  $region28: #{chamfer_loss.1} parent=0 // pred_region
    _
  $region29: #{chamfer_loss.1} parent=0 // pred_fallthru
    _
  // Predicated region
  $region30: #{chamfer_loss.1} parent=0 // pred_check
    _
  $region31: #{chamfer_loss.1} parent=0 // pred_check_branch
    %1129 = sbr.rel (0) target = $region33
  $region32: #{chamfer_loss.1} parent=0 // pred_region
    _
  $region33: #{chamfer_loss.1} parent=0 // pred_fallthru
    _

</llo_original>
